<compile_context>
chip_gen: v7x
topology: tpu7x:2x2x1
jax: 0.10.0
libtpu: 0.0.40
codegen_flags: <defaults>
</compile_context>

<pallas_src>
import jax
import jax.numpy as jnp
from jax import lax
from jax.experimental import pallas as pl
from jax.experimental.pallas import tpu as pltpu


def _linear_logsoftmax_kernel(x_ref, w_ref, b_ref, o_ref):
    # x: (TN, ft_in), w: (C, ft_in) as stored by nn.Linear, b: (1, C), out: (TN, C)
    x = x_ref[...]
    w = w_ref[...]
    b = b_ref[...]
    # Contract over ft_in (dim 1 of both) on the MXU -> (TN, C); f32 accumulate.
    logits = lax.dot_general(
        x, w,
        dimension_numbers=(((1,), (1,)), ((), ())),
        preferred_element_type=jnp.float32,
    ) + b
    # Numerically-stable log_softmax over the class axis (VPU/EUP).
    m = jnp.max(logits, axis=1, keepdims=True)
    shifted = logits - m
    lse = jnp.log(jnp.sum(jnp.exp(shifted), axis=1, keepdims=True))
    o_ref[...] = (shifted - lse).astype(o_ref.dtype)


def _choose_tile_n(n, ft_in, nb_classes, tile_budget_bytes):
    """Largest multiple of 8 (<=512) whose pipelined buffers fit the tile budget."""
    # Double-buffered x tile + double-buffered out tile, f32.
    bytes_per_row = 4 * (2 * ft_in + 2 * nb_classes)
    tn = tile_budget_bytes // max(bytes_per_row, 1)
    tn = max(8, min(int(tn), 512))
    tn = (tn // 8) * 8
    # No point tiling coarser than the (8-aligned) batch itself.
    n_aligned = ((n + 7) // 8) * 8
    return min(tn, n_aligned)


def linear_classifier_forward(seq, weight, bias, *, tile_budget_bytes=8 << 20):
    """seq: (N, ft_in) f32; weight: (nb_classes, ft_in) as in nn.Linear; bias: (nb_classes,)."""
    n, ft_in = seq.shape
    nb_classes = weight.shape[0]

    seq = seq.astype(jnp.float32)
    weight = weight.astype(jnp.float32)
    b2 = bias.reshape(1, nb_classes).astype(jnp.float32)  # 2D for clean lane layout

    tn = _choose_tile_n(n, ft_in, nb_classes, tile_budget_bytes)
    n_pad = ((n + tn - 1) // tn) * tn
    if n_pad != n:
        # Per-row log_softmax => padded rows are independent; they are sliced off below.
        seq = jnp.pad(seq, ((0, n_pad - n), (0, 0)))

    grid = (n_pad // tn,)

    out = pl.pallas_call(
        _linear_logsoftmax_kernel,
        out_shape=jax.ShapeDtypeStruct((n_pad, nb_classes), jnp.float32),
        grid=grid,
        in_specs=[
            pl.BlockSpec((tn, ft_in), lambda i: (i, 0)),           # x tile (pipelined)
            pl.BlockSpec((nb_classes, ft_in), lambda i: (0, 0)),   # weight (resident)
            pl.BlockSpec((1, nb_classes), lambda i: (0, 0)),       # bias (resident)
        ],
        out_specs=pl.BlockSpec((tn, nb_classes), lambda i: (i, 0)),
        compiler_params=pltpu.CompilerParams(
            dimension_semantics=("parallel",),   # batch tiles are independent -> 2 TCs on v7x
            vmem_limit_bytes=32 << 20,           # safe on v7x (64 MiB phys) and v5e/v6e
        ),
    )(seq, weight, b2)

    return out[:n] if n_pad != n else out


def xavier_uniform(key, shape):
    # matches torch.nn.init.xavier_uniform_ for a (fan_out, fan_in) Linear weight
    fan_out, fan_in = shape
    limit = (6.0 / (fan_in + fan_out)) ** 0.5
    return jax.random.uniform(key, shape, minval=-limit, maxval=limit, dtype=jnp.float32)


def reference_forward(seq, weight, bias):
    logits = seq @ weight.T + bias
    return jax.nn.log_softmax(logits, axis=1)


if __name__ == "__main__":
    key = jax.random.PRNGKey(0)
    k_x, k_w, k_x2 = jax.random.split(key, 3)

    # Small shapes consistent with the module.
    N, FT_IN, NB_CLASSES = 8, 32, 8
    seq = jax.random.normal(k_x, (N, FT_IN), dtype=jnp.float32)
    weight = xavier_uniform(k_w, (NB_CLASSES, FT_IN))
    bias = jnp.zeros((NB_CLASSES,), dtype=jnp.float32)

    out = linear_classifier_forward(seq, weight, bias)
    out = jax.block_until_ready(out)
    ref = reference_forward(seq, weight, bias)
    assert out.shape == (N, NB_CLASSES)
    assert jnp.allclose(out, ref, atol=1e-5, rtol=1e-5)

    # Second case exercising the tiled/padded path (grid > 1, N not a tile multiple).
    N2 = 1000
    seq2 = jax.random.normal(k_x2, (N2, FT_IN), dtype=jnp.float32)
    out2 = jax.block_until_ready(linear_classifier_forward(seq2, weight, bias))
    ref2 = reference_forward(seq2, weight, bias)
    assert out2.shape == (N2, NB_CLASSES)
    assert jnp.allclose(out2, ref2, atol=1e-5, rtol=1e-5)

    print("KERNEL_OK")
</pallas_src>

<mosaic_0001>
module attributes {stable_mosaic.version = 11 : i64} {
  func.func @_linear_logsoftmax_kernel(%arg0: i32, %arg1: memref<8x32xf32, #tpu.memory_space<vmem>>, %arg2: memref<8x32xf32, #tpu.memory_space<vmem>>, %arg3: memref<1x8xf32, #tpu.memory_space<vmem>>, %arg4: memref<8x8xf32, #tpu.memory_space<vmem>>) attributes {dimension_semantics = [#tpu.dimension_semantics<parallel>], iteration_bounds = array<i64: 1>, scalar_prefetch = 0 : i64, scratch_operands = 0 : i64, tpu.core_type = #tpu.core_type<tc>, window_params = [{transform_indices = @transform_0, window_bounds = array<i64: 8, 32>}, {pipeline_mode = #tpu.pipeline_mode<synchronous>, transform_indices = @transform_1, window_bounds = array<i64: 8, 32>}, {pipeline_mode = #tpu.pipeline_mode<synchronous>, transform_indices = @transform_2, window_bounds = array<i64: 1, 8>}, {transform_indices = @transform_3, window_bounds = array<i64: 8, 8>}]} {
    %c0 = arith.constant 0 : index
    %c0_0 = arith.constant 0 : index
    %0 = vector.load %arg1[%c0, %c0_0] : memref<8x32xf32, #tpu.memory_space<vmem>>, vector<8x32xf32>
    %c0_1 = arith.constant 0 : index
    %c0_2 = arith.constant 0 : index
    %1 = vector.load %arg2[%c0_1, %c0_2] : memref<8x32xf32, #tpu.memory_space<vmem>>, vector<8x32xf32>
    %c0_3 = arith.constant 0 : index
    %c0_4 = arith.constant 0 : index
    %2 = vector.load %arg3[%c0_3, %c0_4] : memref<1x8xf32, #tpu.memory_space<vmem>>, vector<1x8xf32>
    %cst = arith.constant dense<0.000000e+00> : vector<8x8xf32>
    %3 = tpu.matmul %0, %1, %cst {dimension_numbers = #tpu.dot_dimension_numbers<[1], [1], [0], [0], [0, 0, 1, 0], [], []>} : vector<8x32xf32>, vector<8x32xf32>, vector<8x8xf32> -> vector<8x8xf32>
    %4 = vector.broadcast %2 : vector<1x8xf32> to vector<8x8xf32>
    %5 = arith.addf %3, %4 : vector<8x8xf32>
    %cst_5 = arith.constant dense<0xFF800000> : vector<8xf32>
    %6 = vector.multi_reduction <maximumf>, %5, %cst_5 [1] : vector<8x8xf32> to vector<8xf32>
    %7 = vector.shape_cast %6 : vector<8xf32> to vector<8x1xf32>
    %8 = vector.broadcast %7 : vector<8x1xf32> to vector<8x8xf32>
    %9 = arith.subf %5, %8 : vector<8x8xf32>
    %10 = math.exp %9 : vector<8x8xf32>
    %cst_6 = arith.constant dense<0.000000e+00> : vector<8xf32>
    %11 = vector.multi_reduction <add>, %10, %cst_6 [1] : vector<8x8xf32> to vector<8xf32>
    %12 = vector.shape_cast %11 : vector<8xf32> to vector<8x1xf32>
    %13 = math.log %12 : vector<8x1xf32>
    %14 = vector.broadcast %13 : vector<8x1xf32> to vector<8x8xf32>
    %15 = arith.subf %9, %14 : vector<8x8xf32>
    %c0_7 = arith.constant 0 : index
    %c0_8 = arith.constant 0 : index
    %16 = vector.load %arg4[%c0_7, %c0_8] : memref<8x8xf32, #tpu.memory_space<vmem>>, vector<8x8xf32>
    tpu.vector_store %arg4[%c0_7, %c0_8], %15 {strides = array<i32>} : memref<8x8xf32, #tpu.memory_space<vmem>>, vector<8x8xf32>,
    return
  }
  func.func @transform_0(%arg0: i32) -> (i32, i32) {
    %c0_i32 = arith.constant 0 : i32
    %c0_i32_0 = arith.constant 0 : i32
    return %arg0, %c0_i32 : i32, i32
  }
  func.func @transform_1(%arg0: i32) -> (i32, i32) {
    %c0_i32 = arith.constant 0 : i32
    %c0_i32_0 = arith.constant 0 : i32
    %c0_i32_1 = arith.constant 0 : i32
    return %c0_i32, %c0_i32_0 : i32, i32
  }
  func.func @transform_2(%arg0: i32) -> (i32, i32) {
    %c0_i32 = arith.constant 0 : i32
    %c0_i32_0 = arith.constant 0 : i32
    %c0_i32_1 = arith.constant 0 : i32
    return %c0_i32, %c0_i32_0 : i32, i32
  }
  func.func @transform_3(%arg0: i32) -> (i32, i32) {
    %c0_i32 = arith.constant 0 : i32
    %c0_i32_0 = arith.constant 0 : i32
    return %arg0, %c0_i32 : i32, i32
  }
}

</mosaic_0001>

<llo_original>
// kernel: tpu_custom_call.1
$region0: #{tpu_custom_call.1}
  #allocation0 [shape = 'u32[]', space=smem, size = 0x4, offset = 0x4, fixed_abs, tag = 'smem constant byte address 0x4 - core index']
  #allocation1 [shape = 'u32[144,128]{1,0:T(1,128)}', space=vmem, size = 0x12000, scoped, tag = 'internal scratch']
  %s0 = inlined_call_operand.hbm [shape: f32[8,32], index: 0, kind: input, shape index: {}]
  %s1 = inlined_call_operand.hbm [shape: f32[8,32], index: 1, kind: input, shape index: {}]
  %s2 = inlined_call_operand.vmem [shape: f32[1,8], index: 2, kind: input, shape index: {}]
  %s3 = inlined_call_operand.hbm [shape: f32[8,8], index: 3, kind: output, shape index: {}]
  %s4 = sld [smem:[#allocation0]]
  $region30: #{tpu_custom_call.1} parent=0
    _
  %s6 = ssub.s32 1, %s4
  %s7 = scalar_select 0, %s6, %s4
  $region1: #{tpu_custom_call.1} parent=0
    #allocation2 [shape = 'u8[4096]{0}', space=vmem, size = 0x1000, scoped, tag = 'input window, operand 0, single buffered']
    #allocation3 [shape = 's32[1]{0}', space=sflag, size = 0x4, scoped, tag = 'scoped memory for tpu_custom_call.1']
    #allocation4 [shape = 's32[1]{0}', space=sflag, size = 0x4, scoped, tag = 'scoped memory for tpu_custom_call.1']
    #allocation5 [shape = 'u8[4096]{0}', space=vmem, size = 0x1000, scoped, tag = 'input window, operand 1, single buffered']
    #allocation6 [shape = 's32[1]{0}', space=sflag, size = 0x4, scoped, tag = 'scoped memory for tpu_custom_call.1']
    #allocation7 [shape = 'u8[4096]{0}', space=vmem, size = 0x1000, scoped, tag = 'output window, operand 0, single buffered']
    %8 = vsyncpa [#allocation3], 0
    %9 = vsyncpa [#allocation6], 0
    %10 = vsyncpa [#allocation4], 0
    // Predicated region
    $region2: #{tpu_custom_call.1} parent=1 // pred_check
      _
    $region3: #{tpu_custom_call.1} parent=1 // pred_check_branch
      %12 = sbr.rel (0) target = $region5
    $region4: #{tpu_custom_call.1} parent=1 // pred_region
      %s14 = ssub.s32 128, 128
      %15 = vsyncadd [#allocation3], %s14
      %s17 = sshll.u32 [#allocation2], 4
      %s18 = int_to_ptr.vmem [resolvable:$true] %s17
      %20 = dma.hbm_to_vmem [thread:$0]  %s0, 128, %s18, [#allocation3]
    $region5: #{tpu_custom_call.1} parent=1 // pred_fallthru
      _
    // Predicated region
    $region6: #{tpu_custom_call.1} parent=1 // pred_check
      _
    $region7: #{tpu_custom_call.1} parent=1 // pred_check_branch
      %22 = sbr.rel (0) target = $region9
    $region8: #{tpu_custom_call.1} parent=1 // pred_region
      %s24 = ssub.s32 128, 128
      %25 = vsyncadd [#allocation6], %s24
      %s27 = sshll.u32 [#allocation5], 4
      %s28 = int_to_ptr.vmem [resolvable:$true] %s27
      %30 = dma.hbm_to_vmem [thread:$0]  %s1, 128, %s28, [#allocation6]
    $region9: #{tpu_custom_call.1} parent=1 // pred_fallthru
      _
    // Predicated region
    $region10: #{tpu_custom_call.1} parent=1 // pred_check
      _
    $region11: #{tpu_custom_call.1} parent=1 // pred_check_branch
      %32 = sbr.rel (0) target = $region13
    $region12: #{tpu_custom_call.1} parent=1 // pred_region
      _
    $region13: #{tpu_custom_call.1} parent=1 // pred_fallthru
      _
    // Predicated region
    $region14: #{tpu_custom_call.1} parent=1 // pred_check
      _
    $region15: #{tpu_custom_call.1} parent=1 // pred_check_branch
      %34 = sbr.rel (0) target = $region17
    $region16: #{tpu_custom_call.1} parent=1 // pred_region
      %35 = dma.done [#allocation3], 128
    $region17: #{tpu_custom_call.1} parent=1 // pred_fallthru
      _
    // Predicated region
    $region18: #{tpu_custom_call.1} parent=1 // pred_check
      _
    $region19: #{tpu_custom_call.1} parent=1 // pred_check_branch
      %37 = sbr.rel (0) target = $region21
    $region20: #{tpu_custom_call.1} parent=1 // pred_region
      %38 = dma.done [#allocation6], 128
    $region21: #{tpu_custom_call.1} parent=1 // pred_fallthru
      _
    %v39 = vld [vmem:[#allocation2] sm:$0xff]
    %v40 = vld [vmem:[#allocation5] sm:$0xff]
    %v41 = vld [vmem:[%s2] sm:$0x1]
    %v43 = vlaneseq
    %v44 = vshrl.u32 %v43, 7
    %v45 = vsub.s32 0, %v44
    %v46 = vrot.slane %v41, %v45
    %vm48 = vcmask 261120
    %v50 = vsel %vm48, %v39, 0
    %v53 = vsel %vm48, %v40, 0
    %55 = vmatprep.subr.mxu0 0.0
    %56 = vmatpush1.xpose.msra.mxu0 %v53
    %57 = vmatprep.subr.mxu0 0.0
    %58 = vmatpush1.xpose.msra.mxu0 0.0
    %59 = vmatprep.subr.mxu0 0.0
    %60 = vmatpush1.xpose.msra.mxu0 0.0
    %61 = vmatprep.subr.mxu0 0.0
    %62 = vmatpush1.xpose.msra.mxu0 0.0
    %63 = vmatprep.subr.mxu0 0.0
    %64 = vmatpush1.xpose.msra.mxu0 0.0
    %65 = vmatprep.subr.mxu0 0.0
    %66 = vmatpush1.xpose.msra.mxu0 0.0
    %67 = vmatprep.subr.mxu0 0.0
    %68 = vmatpush1.xpose.msra.mxu0 0.0
    %69 = vmatprep.subr.mxu0 0.0
    %70 = vmatpush1.xpose.msra.mxu0 0.0
    %71 = vmatprep.subr.mxu0 0.0
    %72 = vmatpush1.xpose.msra.mxu0 0.0
    %73 = vmatprep.subr.mxu0 0.0
    %74 = vmatpush1.xpose.msra.mxu0 0.0
    %75 = vmatprep.subr.mxu0 0.0
    %76 = vmatpush1.xpose.msra.mxu0 0.0
    %77 = vmatprep.subr.mxu0 0.0
    %78 = vmatpush1.xpose.msra.mxu0 0.0
    %79 = vmatprep.subr.mxu0 0.0
    %80 = vmatpush1.xpose.msra.mxu0 0.0
    %81 = vmatprep.subr.mxu0 0.0
    %82 = vmatpush1.xpose.msra.mxu0 0.0
    %83 = vmatprep.subr.mxu0 0.0
    %84 = vmatpush1.xpose.msra.mxu0 0.0
    %85 = vmatprep.subr.mxu0 0.0
    %86 = vmatpush1.xpose.msra.mxu0 0.0
    %87 = vmatprep.subr.mxu0 0.0
    %88 = vmatpush1.xpose.msra.mxu0 0.0
    %89 = vmatprep.subr.mxu0 0.0
    %90 = vmatpush1.xpose.msra.mxu0 0.0
    %91 = vmatprep.subr.mxu0 0.0
    %92 = vmatpush1.xpose.msra.mxu0 0.0
    %93 = vmatprep.subr.mxu0 0.0
    %94 = vmatpush1.xpose.msra.mxu0 0.0
    %95 = vmatprep.subr.mxu0 0.0
    %96 = vmatpush1.xpose.msra.mxu0 0.0
    %97 = vmatprep.subr.mxu0 0.0
    %98 = vmatpush1.xpose.msra.mxu0 0.0
    %99 = vmatprep.subr.mxu0 0.0
    %100 = vmatpush1.xpose.msra.mxu0 0.0
    %101 = vmatprep.subr.mxu0 0.0
    %102 = vmatpush1.xpose.msra.mxu0 0.0
    %103 = vmatprep.subr.mxu0 0.0
    %104 = vmatpush1.xpose.msra.mxu0 0.0
    %105 = vmatprep.subr.mxu0 0.0
    %106 = vmatpush1.xpose.msra.mxu0 0.0
    %107 = vmatprep.subr.mxu0 0.0
    %108 = vmatpush1.xpose.msra.mxu0 0.0
    %109 = vmatprep.subr.mxu0 0.0
    %110 = vmatpush1.xpose.msra.mxu0 0.0
    %111 = vmatprep.subr.mxu0 0.0
    %112 = vmatpush1.xpose.msra.mxu0 0.0
    %113 = vmatprep.subr.mxu0 0.0
    %114 = vmatpush1.xpose.msra.mxu0 0.0
    %115 = vmatprep.subr.mxu0 0.0
    %116 = vmatpush1.xpose.msra.mxu0 0.0
    %117 = vmatprep.subr.mxu0 0.0
    %118 = vmatpush1.xpose.msra.mxu0 0.0
    %119 = vmatprep.mubr.f32.mxu0 0.0
    %120 = vmatmul.mubr.f32.gmra.mrb[0].mxu0 %v50
    %v121 = vpop.f32.mrb[0].mxu0
    %v122 = vadd.f32 %v46, %v121
    %v123 = vpop.f32.mrb[0].mxu0
    %124 = vdwg.mxu0
    %vm125 = vcmask 64512
    %v126 = vsel %vm125, %v122, -inf
    %127 = vmax.xlane.f32.xlu0 %v126
    %v128 = vpop.xlane.xlu0 %127
    %v129 = vsub.f32 %v122, %v128
    %v130 = vmul.f32 %v129, 1.442695
    %v131 = vpow.pop %v130
    %v132 = vsel %vm125, %v131, 0.0
    %133 = vadd.xlane.f32.xlu0 %v132
    %v134 = vpop.xlane.xlu0 %133
    %v135 = vlog2.pop %v134
    %v136 = vmul.f32 %v135, 0.6931472
    %v137 = vsub.f32 %v129, %v136
    %138 = vst.msk [vmem:[#allocation7] sm:$0xff] %vm125, %v137
    // Predicated region
    $region22: #{tpu_custom_call.1} parent=1 // pred_check
      _
    $region23: #{tpu_custom_call.1} parent=1 // pred_check_branch
      %140 = sbr.rel (0) target = $region25
    $region24: #{tpu_custom_call.1} parent=1 // pred_region
      %s142 = ssub.s32 128, 128
      %143 = vsyncadd [#allocation4], %s142
      %s145 = sshll.u32 [#allocation7], 4
      %s146 = int_to_ptr.vmem [resolvable:$true] %s145
      %148 = dma.vmem_to_hbm [thread:$0]  %s146, 128, %s3, [#allocation4]
    $region25: #{tpu_custom_call.1} parent=1 // pred_fallthru
      _
    // Predicated region
    $region26: #{tpu_custom_call.1} parent=1 // pred_check
      _
    $region27: #{tpu_custom_call.1} parent=1 // pred_check_branch
      %150 = sbr.rel (0) target = $region29
    $region28: #{tpu_custom_call.1} parent=1 // pred_region
      %151 = dma.done [#allocation4], 128
    $region29: #{tpu_custom_call.1} parent=1 // pred_fallthru
      _
    %152 = vsyncpa [#allocation3], 1
    %153 = vsyncpa [#allocation6], 1
    %154 = vsyncpa [#allocation4], 1

</llo_original>
